<compile_context>
chip_gen: v7x
topology: tpu7x:2x2x1
jax: 0.10.0
libtpu: 0.0.40
codegen_flags: <defaults>
</compile_context>

<pallas_src>
import functools

import jax
import jax.numpy as jnp
from jax import lax
from jax.experimental import pallas as pl
from jax.experimental.pallas import tpu as pltpu


def _round_up(x, m):
    return (x + m - 1) // m * m


def _cdiv(a, b):
    return -(-a // b)


def _bins_mode_kernel(x_ref, o_ref, *, bin_size, min_rating, num_bins, chunk,
                      is_float):
    """One grid step over TN rows.

    x_ref: (TN, K)  input block -- bins on the lane axis (no HBM transpose).
    o_ref: (TN, 1)  float32 rating per row (column layout, relayout-free store).
    """
    rows = x_ref.shape[0]
    k = x_ref.shape[1]
    num_chunks = rows // chunk

    # Hoisted once per grid step (JAX does not CSE broadcast_in_dim).
    kio = lax.broadcasted_iota(jnp.int32, (chunk, k), 1)

    def body(c, carry):
        r0 = pl.multiple_of(c * chunk, chunk)
        x = x_ref[pl.ds(r0, chunk), :]                       # (chunk, K)
        if is_float:
            # torch.argmax treats NaN as the maximum and returns the first
            # NaN index; substituting +inf reproduces that.  (Corner case of a
            # row holding both +inf and a later NaN still picks the +inf.)
            x = jnp.where(jnp.isnan(x), jnp.array(jnp.inf, x.dtype), x)
        m = jnp.max(x, axis=-1, keepdims=True)               # (chunk, 1)
        hit = x == m                                         # first max wins
        idx = jnp.min(jnp.where(hit, kio, num_bins), axis=-1, keepdims=True)
        o_ref[pl.ds(r0, chunk), :] = (
            min_rating + idx.astype(jnp.float32) * bin_size
        ).astype(o_ref.dtype)
        return carry

    unroll = num_chunks if num_chunks <= 2 else 2
    lax.fori_loop(0, num_chunks, body, 0, unroll=unroll)


def bins_mode(inputs, bin_size=1.0, min_rating=1.0, max_rating=5.0, *,
              tile_rows=8192, interpret=False):
    """Pallas equivalent of BinsMode.forward.

    inputs: (..., K) array; argmax over the last axis.
    Returns float32 array with the last axis removed.
    """
    del max_rating  # unused in the forward pass (as in the PyTorch module)
    *lead, K = inputs.shape
    lead = tuple(lead)
    N = 1
    for d in lead:
        N *= int(d)
    if N == 0:
        return jnp.zeros(lead, jnp.float32)

    x2 = inputs.reshape(N, K)            # contiguous view: no transpose, no pad
    itemsize = inputs.dtype.itemsize
    lanes = _round_up(max(K, 1), 128)    # VMEM lane padding of a (TN, K) block

    chunk = 128                          # rows per in-kernel streaming chunk
    if N < 2 * chunk:
        # Tiny problem: one block covering all rows.
        tn = N
        chunk = tn
    else:
        # Dtype-aware cap: <= ~2 MiB of (lane-padded) VMEM per input buffer, so
        # 2x double-buffered input + output stays well under every
        # generation's scoped-VMEM limit (incl. v7x's 64 MiB physical).
        cap = max(chunk, ((2 << 20) // (lanes * itemsize)) // chunk * chunk)
        tn = min(_round_up(int(tile_rows), chunk), cap)
        if _cdiv(N, tn) < 2:
            # Guarantee >=2 grid steps so ("parallel",) can use both v7x TCs
            # and double-buffering stays active.
            tn = _round_up(_cdiv(N, 2), chunk)
    num_tiles = _cdiv(N, tn)

    kernel = functools.partial(
        _bins_mode_kernel,
        bin_size=float(bin_size),
        min_rating=float(min_rating),
        num_bins=int(K),
        chunk=int(chunk),
        is_float=bool(jnp.issubdtype(inputs.dtype, jnp.floating)),
    )

    out = pl.pallas_call(
        kernel,
        out_shape=jax.ShapeDtypeStruct((N, 1), jnp.float32),
        grid=(num_tiles,),
        in_specs=[pl.BlockSpec((tn, K), lambda i: (i, 0))],
        out_specs=pl.BlockSpec((tn, 1), lambda i: (i, 0)),
        compiler_params=pltpu.CompilerParams(
            dimension_semantics=("parallel",),
            vmem_limit_bytes=32 * 1024 * 1024,
        ),
        cost_estimate=pl.CostEstimate(
            flops=6 * N * K,
            transcendentals=0,
            bytes_accessed=N * K * itemsize + N * 4,
        ),
        interpret=interpret,
    )(x2)

    return out.reshape(lead)


if __name__ == "__main__":
    key = jax.random.PRNGKey(0)
    # 5 bins corresponds to ratings 1..5 with bin_size 1.0
    B, S, K = 2, 8, 5
    x = jax.random.normal(key, (B, S, K), dtype=jnp.float32)
    out = jax.block_until_ready(bins_mode(x, bin_size=1.0, min_rating=1.0,
                                          max_rating=5.0))
    ref = 1.0 + jnp.argmax(x, axis=-1).astype(jnp.float32) * 1.0
    assert out.shape == ref.shape == (B, S)
    assert out.dtype == jnp.float32
    assert jnp.array_equal(out, ref)

    # Multi-tile path: >=2 grid steps, partial last block, in-kernel chunk loop.
    x2 = jax.random.normal(jax.random.PRNGKey(1), (4, 300, 7), dtype=jnp.float32)
    out2 = jax.block_until_ready(bins_mode(x2, bin_size=0.5, min_rating=1.0))
    ref2 = 1.0 + jnp.argmax(x2, axis=-1).astype(jnp.float32) * 0.5
    assert jnp.array_equal(out2, ref2)

    # bf16 inputs taken natively (dtype-aware tiling, no wrapper upcast).
    x3 = jax.random.normal(jax.random.PRNGKey(2), (2, 257, 5), dtype=jnp.bfloat16)
    out3 = jax.block_until_ready(bins_mode(x3))
    ref3 = 1.0 + jnp.argmax(x3, axis=-1).astype(jnp.float32) * 1.0
    assert jnp.array_equal(out3, ref3)

    # Tie-break: first maximal index wins (torch.argmax semantics).
    x4 = jnp.array([[[1.0, 3.0, 3.0, 0.0, 3.0]]], dtype=jnp.float32)
    out4 = jax.block_until_ready(bins_mode(x4))
    assert jnp.array_equal(out4, jnp.array([[2.0]], dtype=jnp.float32))

    # NaN: torch.argmax treats NaN as the maximum -> first NaN index (here 1).
    x5 = jnp.array([[[0.0, jnp.nan, 7.0, 2.0, 1.0]]], dtype=jnp.float32)
    out5 = jax.block_until_ready(bins_mode(x5))
    assert jnp.array_equal(out5, jnp.array([[2.0]], dtype=jnp.float32))

    print("KERNEL_OK")
</pallas_src>

<mosaic_0001>
module attributes {stable_mosaic.version = 11 : i64} {
  func.func @_bins_mode_kernel(%arg0: i32, %arg1: memref<16x5xf32, #tpu.memory_space<vmem>>, %arg2: memref<16x1xf32, #tpu.memory_space<vmem>>) attributes {dimension_semantics = [#tpu.dimension_semantics<parallel>], iteration_bounds = array<i64: 1>, scalar_prefetch = 0 : i64, scratch_operands = 0 : i64, tpu.core_type = #tpu.core_type<tc>, window_params = [{transform_indices = @transform_0, window_bounds = array<i64: 16, 5>}, {transform_indices = @transform_1, window_bounds = array<i64: 16, 1>}]} {
    %0 = tpu.iota {dimensions = array<i32: 1>} : vector<16x5xi32>
    %c0_i32 = arith.constant 0 : i32
    %c16_i32 = arith.constant 16 : i32
    %1 = arith.muli %c0_i32, %c16_i32 : i32
    %2 = tpu.assume_multiple %1, 16 : i32
    %3 = arith.index_cast %2 : i32 to index
    %c0 = arith.constant 0 : index
    %4 = vector.load %arg1[%3, %c0] : memref<16x5xf32, #tpu.memory_space<vmem>>, vector<16x5xf32>
    %5 = arith.cmpf one, %4, %4 : vector<16x5xf32>
    %cst = arith.constant 0x7F800000 : f32
    %6 = vector.broadcast %cst : f32 to vector<16x5xf32>
    %7 = arith.select %5, %6, %4 : vector<16x5xi1>, vector<16x5xf32>
    %cst_0 = arith.constant dense<0xFF800000> : vector<16xf32>
    %8 = vector.multi_reduction <maximumf>, %7, %cst_0 [1] : vector<16x5xf32> to vector<16xf32>
    %9 = vector.shape_cast %8 : vector<16xf32> to vector<16x1xf32>
    %10 = vector.broadcast %9 : vector<16x1xf32> to vector<16x5xf32>
    %11 = arith.cmpf oeq, %7, %10 : vector<16x5xf32>
    %c5_i32 = arith.constant 5 : i32
    %12 = vector.broadcast %c5_i32 : i32 to vector<16x5xi32>
    %13 = arith.select %11, %0, %12 : vector<16x5xi1>, vector<16x5xi32>
    %cst_1 = arith.constant dense<2147483647> : vector<16xi32>
    %14 = vector.multi_reduction <minsi>, %13, %cst_1 [1] : vector<16x5xi32> to vector<16xi32>
    %15 = vector.shape_cast %14 : vector<16xi32> to vector<16x1xi32>
    %16 = arith.sitofp %15 : vector<16x1xi32> to vector<16x1xf32>
    %cst_2 = arith.constant 1.000000e+00 : f32
    %17 = vector.broadcast %cst_2 : f32 to vector<16x1xf32>
    %18 = arith.mulf %16, %17 : vector<16x1xf32>
    %cst_3 = arith.constant 1.000000e+00 : f32
    %19 = vector.broadcast %cst_3 : f32 to vector<16x1xf32>
    %20 = arith.addf %19, %18 : vector<16x1xf32>
    %21 = arith.index_cast %2 : i32 to index
    %c0_4 = arith.constant 0 : index
    %22 = vector.load %arg2[%21, %c0_4] : memref<16x1xf32, #tpu.memory_space<vmem>>, vector<16x1xf32>
    tpu.vector_store %arg2[%21, %c0_4], %20 {strides = array<i32>} : memref<16x1xf32, #tpu.memory_space<vmem>>, vector<16x1xf32>,
    %c1_i32 = arith.constant 1 : i32
    return
  }
  func.func @transform_0(%arg0: i32) -> (i32, i32) {
    %c0_i32 = arith.constant 0 : i32
    %c0_i32_0 = arith.constant 0 : i32
    return %arg0, %c0_i32 : i32, i32
  }
  func.func @transform_1(%arg0: i32) -> (i32, i32) {
    %c0_i32 = arith.constant 0 : i32
    %c0_i32_0 = arith.constant 0 : i32
    return %arg0, %c0_i32 : i32, i32
  }
}

</mosaic_0001>

<llo_original>
// kernel: tpu_custom_call.1
$region0: #{tpu_custom_call.1}
  #allocation0 [shape = 'u32[]', space=smem, size = 0x4, offset = 0x4, fixed_abs, tag = 'smem constant byte address 0x4 - core index']
  #allocation1 [shape = 'u32[144,128]{1,0:T(1,128)}', space=vmem, size = 0x12000, scoped, tag = 'internal scratch']
  %s0 = inlined_call_operand.vmem [shape: f32[16,5], index: 0, kind: input, shape index: {}]
  %s1 = inlined_call_operand.vmem [shape: f32[16,1], index: 1, kind: output, shape index: {}]
  %s2 = sld [smem:[#allocation0]]
  $region14: #{tpu_custom_call.1} parent=0
    _
  %s4 = ssub.s32 1, %s2
  %s5 = scalar_select 0, %s4, %s2
  // Predicated region
  $region2: #{tpu_custom_call.1} parent=0 // pred_check
    _
  $region3: #{tpu_custom_call.1} parent=0 // pred_check_branch
    %7 = sbr.rel (0) target = $region5
  $region4: #{tpu_custom_call.1} parent=0 // pred_region
    _
  $region5: #{tpu_custom_call.1} parent=0 // pred_fallthru
    _
  %v8 = vlaneseq
  %v9 = vand.u32 %v8, 127
  %v10 = vld [vmem:[%s0] sm:$0xff]
  %v11 = vld [vmem:[%s0 + $0x8] sm:$0xff]
  %vm12 = vcmp.ne.f32.partialorder %v10, %v10
  %vm13 = vcmp.ne.f32.partialorder %v11, %v11
  %v14 = vsel %vm12, inf, %v10
  %v15 = vsel %vm13, inf, %v11
  %vm16 = vcmask 39936
  %v17 = vsel %vm16, %v14, -inf
  %18 = vmax.xlane.f32.xlu0 %v17
  %v19 = vpop.xlane.xlu0 %18
  %v20 = vsel %vm16, %v15, -inf
  %21 = vmax.xlane.f32.xlu0 %v20
  %v22 = vpop.xlane.xlu0 %21
  %vm23 = vcmp.eq.f32.partialorder %v14, %v19
  %vm24 = vcmp.eq.f32.partialorder %v15, %v22
  %v25 = vsel %vm23, %v9, 5
  %v26 = vsel %vm24, %v9, 5
  %v27 = vsel %vm16, %v25, 2147483647
  %v28 = vand.u32 %v27, 65535
  %v29 = vshra.s32 %v27, 16
  %v30 = vcvt.s32.f32 %v28
  %v31 = vcvt.s32.f32 %v29
  %32 = vmin.xlane.f32.xlu0 %v31
  %v33 = vpop.xlane.xlu0 %32
  %vm34 = vcmp.eq.f32.partialorder %v31, %v33
  %v35 = vsel %vm34, %v30, inf
  %36 = vmin.xlane.f32.xlu0 %v35
  %v37 = vpop.xlane.xlu0 %36
  %v38 = vcvt.f32.s32 %v37
  %v39 = vcvt.f32.s32 %v33
  %v40 = vshll.u32 %v39, 16
  %v41 = vadd.s32 %v40, %v38
  %v42 = vsel %vm16, %v26, 2147483647
  %v43 = vand.u32 %v42, 65535
  %v44 = vshra.s32 %v42, 16
  %v45 = vcvt.s32.f32 %v43
  %v46 = vcvt.s32.f32 %v44
  %47 = vmin.xlane.f32.xlu0 %v46
  %v48 = vpop.xlane.xlu0 %47
  %vm49 = vcmp.eq.f32.partialorder %v46, %v48
  %v50 = vsel %vm49, %v45, inf
  %51 = vmin.xlane.f32.xlu0 %v50
  %v52 = vpop.xlane.xlu0 %51
  %v53 = vcvt.f32.s32 %v52
  %v54 = vcvt.f32.s32 %v48
  %v55 = vshll.u32 %v54, 16
  %v56 = vadd.s32 %v55, %v53
  %v57 = vcvt.s32.f32 %v41
  %v58 = vcvt.s32.f32 %v56
  %v59 = vadd.f32 %v57, 1.0
  %v60 = vadd.f32 %v58, 1.0
  %vm61 = vcmask 7168
  %62 = vst.msk [vmem:[%s1] sm:$0xff] %vm61, %v59
  %63 = vst.msk [vmem:[%s1 + $0x8] sm:$0xff] %vm61, %v60
  // Predicated region
  $region6: #{tpu_custom_call.1} parent=0 // pred_check
    _
  $region7: #{tpu_custom_call.1} parent=0 // pred_check_branch
    %65 = sbr.rel (0) target = $region9
  $region8: #{tpu_custom_call.1} parent=0 // pred_region
    _
  $region9: #{tpu_custom_call.1} parent=0 // pred_fallthru
    _
  // Predicated region
  $region10: #{tpu_custom_call.1} parent=0 // pred_check
    _
  $region11: #{tpu_custom_call.1} parent=0 // pred_check_branch
    %67 = sbr.rel (0) target = $region13
  $region12: #{tpu_custom_call.1} parent=0 // pred_region
    _
  $region13: #{tpu_custom_call.1} parent=0 // pred_fallthru
    _

</llo_original>
